<compile_context>
chip_gen: v6e
topology: v6e:2x2x1
jax: 0.10.0
libtpu: 0.0.40
codegen_flags: <defaults>
</compile_context>

<pallas_src>
import jax
import jax.numpy as jnp
from jax.experimental import pallas as pl
from jax.experimental.pallas import tpu as pltpu


def _round_up(n: int, m: int) -> int:
    return ((n + m - 1) // m) * m


def _tsmix_head_kernel(x_ref, w1t_ref, b1_ref, w2_ref, b2_ref, o_ref):
    """Projection head of TSMixRegressor (one batch tile).

    x_ref  : (TB, C*L)  flattened input tile (channels concatenated on lanes)
    w1t_ref: (L, L)     first Linear weight, pre-transposed, bf16 (resident)
    b1_ref : (1, L)     first Linear bias, f32 (resident)
    w2_ref : (1, L)     second Linear weight row, f32 (resident)
    b2_ref : (1,)       second Linear bias, f32 scalar in SMEM
    o_ref  : (8, TB)    lane-dense output slab (result broadcast on sublanes)
    """
    L = w1t_ref.shape[0]
    C = x_ref.shape[1] // L

    x = x_ref[...].astype(jnp.float32)                              # (TB, C*L)

    # Channel mean: C static lane-slice adds (slices at L-lane boundaries when
    # L % 128 == 0 -> no cross-lane movement) + one exact f32 scalar multiply.
    s = x[:, 0:L]
    for c in range(1, C):
        s = s + x[:, c * L:(c + 1) * L]
    s = s * (1.0 / C)                                                # (TB, L)

    # Dropout is identity at inference.  MXU stage: bf16 operands, f32 accum.
    h = jnp.dot(s.astype(jnp.bfloat16), w1t_ref[...],
                preferred_element_type=jnp.float32)                  # (TB, L)
    h = jnp.maximum(h + b1_ref[...], 0.0)                            # bias+ReLU

    # Second Linear (out_features=1) as VPU multiply + lane reduce.
    o = jnp.sum(h * w2_ref[...], axis=-1) + b2_ref[0]                # (TB,)

    # Lane-dense store: broadcast the TB results across 8 sublanes so the tile
    # writeback is full-width unmasked stores + one dense DMA (output is tiny,
    # so the 8x writeback bytes are negligible).
    o_ref[...] = jnp.broadcast_to(o.reshape(1, -1), o_ref.shape).astype(o_ref.dtype)


def _choose_tile_rows(batch: int, row_bytes: int, c: int, l: int,
                      vmem_budget: int) -> int:
    """Pick the batch-tile size TB (multiple of 8)."""
    b8 = _round_up(batch, 8)
    # Per-row VMEM: double-buffered input tile + f32 working copy + (s, h)
    # intermediates + double-buffered output slab rows.
    per_row_vmem = 2 * row_bytes + c * l * 4 + 4 * l * 4 + 2 * 8 * 4
    cap = max(8, ((vmem_budget * 3 // 4) // per_row_vmem) // 8 * 8)
    # ~8 MiB per input tile amortizes the ~0.35 us per-grid-step overhead.
    target = max(8, ((8 << 20) // row_bytes) // 8 * 8)
    quarter = _round_up(pl.cdiv(batch, 4), 8)
    if quarter * row_bytes >= (2 << 20):
        # Large batch: >=4 grid steps (2 per TensorCore on v7x megacore) with
        # ~8 MiB tiles; ragged-last-tile padding stays tiny relative to B.
        return max(8, min(cap, target, quarter))
    # Small/medium batch: single tile (at most 7 rows of over-read).
    return max(8, min(cap, b8))


def tsmix_regressor_forward(x, params):
    """TSMixRegressor.forward for n_block=0, revin=False, gmlp_proj=False.

    x: (B, C, L) float array (f32 or bf16).  params: torch-layout Linear
    weights/biases.  Returns (B, 1) float32.
    """
    B, C, L = x.shape
    w1 = params["w1"]          # (L, L)  torch Linear(seq_len, seq_len).weight
    b1 = params["b1"]          # (L,)
    w2 = params["w2"]          # (1, L)  torch Linear(seq_len, 1).weight
    b2 = params["b2"]          # (1,)

    # --- weight prep (once, tiny) --------------------------------------------
    # Plain bf16(w1^T) for the MXU; the exact 1/C mean scale is applied in f32
    # inside the kernel (free VPU scalar mul, better parity with torch).
    w1t = jnp.transpose(w1).astype(jnp.bfloat16)
    b1_row = b1.reshape(1, L).astype(jnp.float32)
    w2_row = w2.reshape(1, L).astype(jnp.float32)
    b2_s = b2.reshape(1).astype(jnp.float32)

    # --- free layout: (B, C, L) -> (B, C*L) metadata-only reshape ------------
    x2 = x.reshape(B, C * L)
    row_bytes = C * L * x2.dtype.itemsize

    # --- chip-derived VMEM budget --------------------------------------------
    try:
        vmem_cap = pltpu.get_tpu_info().vmem_capacity_bytes
    except Exception:
        vmem_cap = 64 << 20          # conservative fallback (v7x per-TC VMEM)
    vmem_budget = int(0.75 * vmem_cap)

    TB = _choose_tile_rows(B, row_bytes, C, L, vmem_budget)
    grid_b = pl.cdiv(B, TB)          # ragged last tile handled by Pallas masking

    # Estimated VMEM use (double-buffered tiles + intermediates + weights).
    x_tile_bytes = TB * row_bytes
    est = (2 * x_tile_bytes + TB * C * L * 4 + 2 * TB * L * 4
           + 2 * 8 * TB * 4 + L * L * 2 + 4 * L * 4 + (2 << 20))
    vmem_limit = min(max(est, 16 << 20), vmem_budget)

    cost = pl.CostEstimate(
        flops=int(2 * B * L * L + 2 * B * C * L + 4 * B * L),
        transcendentals=0,
        bytes_accessed=int(B * C * L * x2.dtype.itemsize
                           + L * L * 2 + (3 * L + 1) * 4 + grid_b * 8 * TB * 4),
    )

    out = pl.pallas_call(
        _tsmix_head_kernel,
        out_shape=jax.ShapeDtypeStruct((grid_b, 8, TB), jnp.float32),
        grid=(grid_b,),
        in_specs=[
            # x: one contiguous DMA per batch tile (no per-channel strides).
            pl.BlockSpec((TB, C * L), lambda i: (i, 0)),
            # Weights / biases: constant block index -> resident, DMA'd once.
            pl.BlockSpec((L, L), lambda i: (0, 0)),
            pl.BlockSpec((1, L), lambda i: (0, 0)),
            pl.BlockSpec((1, L), lambda i: (0, 0)),
            # Scalar bias in SMEM (no padded VMEM tile, no per-tile DMA).
            pl.BlockSpec(memory_space=pltpu.MemorySpace.SMEM),
        ],
        # Lane-dense output slab per tile.
        out_specs=pl.BlockSpec((None, 8, TB), lambda i: (i, 0, 0)),
        compiler_params=pltpu.CompilerParams(
            dimension_semantics=("parallel",),   # v7x: shard tiles across 2 TCs
            vmem_limit_bytes=vmem_limit,
        ),
        cost_estimate=cost,
    )(x2, w1t, b1_row, w2_row, b2_s)

    # Row 0 of each sublane-broadcast slab holds the result; drop padded rows.
    return out[:, 0, :].reshape(-1)[:B].reshape(B, 1)


if __name__ == "__main__":
    # Small shapes consistent with the module: batch=8, ch_in=4, seq_len=128.
    # hidden_size is unused when n_block == 0 but kept for signature fidelity.
    B, C, L, HIDDEN = 8, 4, 128, 32

    key = jax.random.PRNGKey(0)
    kx, k1, k2, k3, k4 = jax.random.split(key, 5)

    x = jax.random.normal(kx, (B, C, L), dtype=jnp.float32)

    # Deterministic PyTorch-style Linear init: U(-1/sqrt(fan_in), 1/sqrt(fan_in)).
    bound = 1.0 / (L ** 0.5)
    params = {
        "w1": jax.random.uniform(k1, (L, L), minval=-bound, maxval=bound,
                                 dtype=jnp.float32),
        "b1": jax.random.uniform(k2, (L,), minval=-bound, maxval=bound,
                                 dtype=jnp.float32),
        "w2": jax.random.uniform(k3, (1, L), minval=-bound, maxval=bound,
                                 dtype=jnp.float32),
        "b2": jax.random.uniform(k4, (1,), minval=-bound, maxval=bound,
                                 dtype=jnp.float32),
    }

    out = tsmix_regressor_forward(x, params)
    out = jax.block_until_ready(out)

    # Pure-JAX f32 reference of the same forward pass (dropout = identity).
    m_ref = x.mean(axis=1)
    h_ref = jnp.maximum(m_ref @ params["w1"].T + params["b1"], 0.0)
    ref = h_ref @ params["w2"].T + params["b2"]

    assert out.shape == (B, 1), out.shape
    # Tolerance accounts for the bf16 MXU stage (f32 accumulation).
    assert jnp.allclose(out, ref, atol=2e-2, rtol=1e-2), (
        "mismatch vs reference: max abs diff = %g" % float(jnp.max(jnp.abs(out - ref))))
    print("KERNEL_OK")
</pallas_src>

<mosaic_0001>
module attributes {stable_mosaic.version = 11 : i64} {
  func.func @_tsmix_head_kernel(%arg0: i32, %arg1: memref<8x512xf32, #tpu.memory_space<vmem>>, %arg2: memref<128x128xbf16, #tpu.memory_space<vmem>>, %arg3: memref<1x128xf32, #tpu.memory_space<vmem>>, %arg4: memref<1x128xf32, #tpu.memory_space<vmem>>, %arg5: memref<1xf32, #tpu.memory_space<smem>>, %arg6: memref<1x8x8xf32, #tpu.memory_space<vmem>>) attributes {dimension_semantics = [#tpu.dimension_semantics<parallel>], iteration_bounds = array<i64: 1>, scalar_prefetch = 0 : i64, scratch_operands = 0 : i64, tpu.core_type = #tpu.core_type<tc>, window_params = [{transform_indices = @transform_0, window_bounds = array<i64: 8, 512>}, {pipeline_mode = #tpu.pipeline_mode<synchronous>, transform_indices = @transform_1, window_bounds = array<i64: 128, 128>}, {pipeline_mode = #tpu.pipeline_mode<synchronous>, transform_indices = @transform_2, window_bounds = array<i64: 1, 128>}, {pipeline_mode = #tpu.pipeline_mode<synchronous>, transform_indices = @transform_3, window_bounds = array<i64: 1, 128>}, {transform_indices = @transform_4, window_bounds = array<i64: 1>}, {transform_indices = @transform_5, window_bounds = array<i64: 1, 8, 8>}]} {
    %c0 = arith.constant 0 : index
    %c0_0 = arith.constant 0 : index
    %0 = vector.load %arg1[%c0, %c0_0] : memref<8x512xf32, #tpu.memory_space<vmem>>, vector<8x512xf32>
    %1 = vector.extract_strided_slice %0 {offsets = [0, 0], sizes = [8, 128], strides = [1, 1]} : vector<8x512xf32> to vector<8x128xf32>
    %2 = vector.extract_strided_slice %0 {offsets = [0, 128], sizes = [8, 128], strides = [1, 1]} : vector<8x512xf32> to vector<8x128xf32>
    %3 = arith.addf %1, %2 : vector<8x128xf32>
    %4 = vector.extract_strided_slice %0 {offsets = [0, 256], sizes = [8, 128], strides = [1, 1]} : vector<8x512xf32> to vector<8x128xf32>
    %5 = arith.addf %3, %4 : vector<8x128xf32>
    %6 = vector.extract_strided_slice %0 {offsets = [0, 384], sizes = [8, 128], strides = [1, 1]} : vector<8x512xf32> to vector<8x128xf32>
    %7 = arith.addf %5, %6 : vector<8x128xf32>
    %cst = arith.constant 2.500000e-01 : f32
    %8 = vector.broadcast %cst : f32 to vector<8x128xf32>
    %9 = arith.mulf %7, %8 : vector<8x128xf32>
    %10 = arith.truncf %9 : vector<8x128xf32> to vector<8x128xbf16>
    %c0_1 = arith.constant 0 : index
    %c0_2 = arith.constant 0 : index
    %11 = vector.load %arg2[%c0_1, %c0_2] : memref<128x128xbf16, #tpu.memory_space<vmem>>, vector<128x128xbf16>
    %cst_3 = arith.constant dense<0.000000e+00> : vector<8x128xf32>
    %12 = tpu.matmul %10, %11, %cst_3 {dimension_numbers = #tpu.dot_dimension_numbers<[1], [0], [0], [1], [0, 0, 1, 1], [], []>} : vector<8x128xbf16>, vector<128x128xbf16>, vector<8x128xf32> -> vector<8x128xf32>
    %c0_4 = arith.constant 0 : index
    %c0_5 = arith.constant 0 : index
    %13 = vector.load %arg3[%c0_4, %c0_5] : memref<1x128xf32, #tpu.memory_space<vmem>>, vector<1x128xf32>
    %14 = vector.broadcast %13 : vector<1x128xf32> to vector<8x128xf32>
    %15 = arith.addf %12, %14 : vector<8x128xf32>
    %cst_6 = arith.constant 0.000000e+00 : f32
    %16 = vector.broadcast %cst_6 : f32 to vector<8x128xf32>
    %17 = arith.maximumf %15, %16 : vector<8x128xf32>
    %c0_7 = arith.constant 0 : index
    %c0_8 = arith.constant 0 : index
    %18 = vector.load %arg4[%c0_7, %c0_8] : memref<1x128xf32, #tpu.memory_space<vmem>>, vector<1x128xf32>
    %19 = vector.broadcast %18 : vector<1x128xf32> to vector<8x128xf32>
    %20 = arith.mulf %17, %19 : vector<8x128xf32>
    %cst_9 = arith.constant dense<0.000000e+00> : vector<8xf32>
    %21 = vector.multi_reduction <add>, %20, %cst_9 [1] : vector<8x128xf32> to vector<8xf32>
    %c0_10 = arith.constant 0 : index
    %22 = memref.load %arg5[%c0_10] : memref<1xf32, #tpu.memory_space<smem>>
    %23 = vector.broadcast %22 : f32 to vector<8xf32>
    %24 = arith.addf %21, %23 : vector<8xf32>
    %25 = vector.shape_cast %24 : vector<8xf32> to vector<1x8xf32>
    %26 = vector.shape_cast %25 : vector<1x8xf32> to vector<1x8xf32>
    %27 = vector.broadcast %26 : vector<1x8xf32> to vector<8x8xf32>
    %c0_11 = arith.constant 0 : index
    %c0_12 = arith.constant 0 : index
    %c0_13 = arith.constant 0 : index
    %28 = vector.load %arg6[%c0_11, %c0_12, %c0_13] : memref<1x8x8xf32, #tpu.memory_space<vmem>>, vector<1x8x8xf32>
    %29 = vector.shape_cast %28 : vector<1x8x8xf32> to vector<8x8xf32>
    %30 = vector.shape_cast %27 : vector<8x8xf32> to vector<1x8x8xf32>
    tpu.vector_store %arg6[%c0_11, %c0_12, %c0_13], %30 {strides = array<i32>} : memref<1x8x8xf32, #tpu.memory_space<vmem>>, vector<1x8x8xf32>,
    return
  }
  func.func @transform_0(%arg0: i32) -> (i32, i32) {
    %c0_i32 = arith.constant 0 : i32
    %c0_i32_0 = arith.constant 0 : i32
    return %arg0, %c0_i32 : i32, i32
  }
  func.func @transform_1(%arg0: i32) -> (i32, i32) {
    %c0_i32 = arith.constant 0 : i32
    %c0_i32_0 = arith.constant 0 : i32
    %c0_i32_1 = arith.constant 0 : i32
    return %c0_i32, %c0_i32_0 : i32, i32
  }
  func.func @transform_2(%arg0: i32) -> (i32, i32) {
    %c0_i32 = arith.constant 0 : i32
    %c0_i32_0 = arith.constant 0 : i32
    %c0_i32_1 = arith.constant 0 : i32
    return %c0_i32, %c0_i32_0 : i32, i32
  }
  func.func @transform_3(%arg0: i32) -> (i32, i32) {
    %c0_i32 = arith.constant 0 : i32
    %c0_i32_0 = arith.constant 0 : i32
    %c0_i32_1 = arith.constant 0 : i32
    return %c0_i32, %c0_i32_0 : i32, i32
  }
  func.func @transform_4(%arg0: i32) -> i32 {
    %c0_i32 = arith.constant 0 : i32
    %c0_i32_0 = arith.constant 0 : i32
    return %c0_i32 : i32
  }
  func.func @transform_5(%arg0: i32) -> (i32, i32, i32) {
    %c0_i32 = arith.constant 0 : i32
    %c0_i32_0 = arith.constant 0 : i32
    %c0_i32_1 = arith.constant 0 : i32
    return %arg0, %c0_i32, %c0_i32_0 : i32, i32, i32
  }
}

</mosaic_0001>

<llo_original>
// kernel: tpu_custom_call.1
$region0: #{tpu_custom_call.1}
  #allocation0 [shape = 'u32[]', space=smem, size = 0x4, offset = 0x4, fixed_abs, tag = 'smem constant byte address 0x4 - core index']
  #allocation1 [shape = 'u32[144,128]{1,0:T(1,128)}', space=vmem, size = 0x12000, scoped, tag = 'internal scratch']
  #allocation2 [shape = 'f32[1]{0:T(128)S(6)}', space=smem, size = 0x200, scoped, tag = 'scoped memory for tpu_custom_call.1']
  %s0 = inlined_call_operand.hbm [shape: f32[8,512], index: 0, kind: input, shape index: {}]
  %s1 = inlined_call_operand.hbm [shape: bf16[128,128], index: 1, kind: input, shape index: {}]
  %s2 = inlined_call_operand.vmem [shape: f32[1,128], index: 2, kind: input, shape index: {}]
  %s3 = inlined_call_operand.vmem [shape: f32[1,128], index: 3, kind: input, shape index: {}]
  %s4 = inlined_call_operand.<no memory space> [shape: f32[1], index: 4, kind: input, shape index: {}]
  %s5 = inlined_call_operand.hbm [shape: f32[1,8,8], index: 5, kind: output, shape index: {}]
  %s6 = sld [smem:[#allocation0]]
  $region38: #{tpu_custom_call.1} parent=0
    _
  %s8 = ssub.s32 1, %s6
  %s9 = scalar_select 0, %s8, %s6
  %10 = sst [smem:[#allocation2]] %s4
  $region1: #{tpu_custom_call.1} parent=0
    #allocation3 [shape = 'u8[16384]{0}', space=vmem, size = 0x4000, scoped, tag = 'input window, operand 0, single buffered']
    #allocation4 [shape = 's32[1]{0}', space=sflag, size = 0x4, scoped, tag = 'scoped memory for tpu_custom_call.1']
    #allocation5 [shape = 's32[1]{0}', space=sflag, size = 0x4, scoped, tag = 'scoped memory for tpu_custom_call.1']
    #allocation6 [shape = 'u8[32768]{0}', space=vmem, size = 0x8000, scoped, tag = 'input window, operand 1, single buffered']
    #allocation7 [shape = 's32[1]{0}', space=sflag, size = 0x4, scoped, tag = 'scoped memory for tpu_custom_call.1']
    #allocation8 [shape = 'u8[4096]{0}', space=vmem, size = 0x1000, scoped, tag = 'output window, operand 0, single buffered']
    %11 = vsyncpa [#allocation4], 0
    %12 = vsyncpa [#allocation7], 0
    %13 = vsyncpa [#allocation5], 0
    // Predicated region
    $region2: #{tpu_custom_call.1} parent=1 // pred_check
      _
    $region3: #{tpu_custom_call.1} parent=1 // pred_check_branch
      %15 = sbr.rel (0) target = $region5
    $region4: #{tpu_custom_call.1} parent=1 // pred_region
      %s17 = ssub.s32 512, 512
      %18 = vsyncadd [#allocation4], %s17
      %s20 = sshll.u32 [#allocation3], 4
      %s21 = int_to_ptr.vmem [resolvable:$true] %s20
      %23 = dma.hbm_to_vmem [thread:$0]  %s0, 512, %s21, [#allocation4]
    $region5: #{tpu_custom_call.1} parent=1 // pred_fallthru
      _
    // Predicated region
    $region6: #{tpu_custom_call.1} parent=1 // pred_check
      _
    $region7: #{tpu_custom_call.1} parent=1 // pred_check_branch
      %25 = sbr.rel (0) target = $region9
    $region8: #{tpu_custom_call.1} parent=1 // pred_region
      %s27 = ssub.s32 1024, 1024
      %28 = vsyncadd [#allocation7], %s27
      %s29 = sshll.u32 [#allocation6], 4
      %s30 = int_to_ptr.vmem [resolvable:$true] %s29
      %35 = dma.hbm_to_vmem [thread:$0]  %s1, 1024, %s30, [#allocation7], 64, 64, 4
    $region9: #{tpu_custom_call.1} parent=1 // pred_fallthru
      _
    // Predicated region
    $region10: #{tpu_custom_call.1} parent=1 // pred_check
      _
    $region11: #{tpu_custom_call.1} parent=1 // pred_check_branch
      %37 = sbr.rel (0) target = $region13
    $region12: #{tpu_custom_call.1} parent=1 // pred_region
      _
    $region13: #{tpu_custom_call.1} parent=1 // pred_fallthru
      _
    // Predicated region
    $region14: #{tpu_custom_call.1} parent=1 // pred_check
      _
    $region15: #{tpu_custom_call.1} parent=1 // pred_check_branch
      %39 = sbr.rel (0) target = $region17
    $region16: #{tpu_custom_call.1} parent=1 // pred_region
      _
    $region17: #{tpu_custom_call.1} parent=1 // pred_fallthru
      _
    // Predicated region
    $region18: #{tpu_custom_call.1} parent=1 // pred_check
      _
    $region19: #{tpu_custom_call.1} parent=1 // pred_check_branch
      %41 = sbr.rel (0) target = $region21
    $region20: #{tpu_custom_call.1} parent=1 // pred_region
      _
    $region21: #{tpu_custom_call.1} parent=1 // pred_fallthru
      _
    // Predicated region
    $region22: #{tpu_custom_call.1} parent=1 // pred_check
      _
    $region23: #{tpu_custom_call.1} parent=1 // pred_check_branch
      %43 = sbr.rel (0) target = $region25
    $region24: #{tpu_custom_call.1} parent=1 // pred_region
      %44 = dma.done [#allocation4], 512
    $region25: #{tpu_custom_call.1} parent=1 // pred_fallthru
      _
    // Predicated region
    $region26: #{tpu_custom_call.1} parent=1 // pred_check
      _
    $region27: #{tpu_custom_call.1} parent=1 // pred_check_branch
      %46 = sbr.rel (0) target = $region29
    $region28: #{tpu_custom_call.1} parent=1 // pred_region
      %47 = dma.done [#allocation7], 1024
    $region29: #{tpu_custom_call.1} parent=1 // pred_fallthru
      _
    %v49 = vld [vmem:[#allocation3] sm:$0xff]
    %v50 = vld [vmem:[#allocation3 + $0x8] sm:$0xff]
    %v51 = vld [vmem:[#allocation3 + $0x10] sm:$0xff]
    %v52 = vld [vmem:[#allocation3 + $0x18] sm:$0xff]
    %v53 = vadd.f32 %v49, %v50
    %v54 = vadd.f32 %v53, %v51
    %v55 = vadd.f32 %v54, %v52
    %v56 = vmul.f32 %v55, 0.25
    %v57 = vpack.c.bf16 %v56, %v56
    %v58 = vld [vmem:[#allocation6] sm:$0xf]
    %v59 = vld [vmem:[#allocation6 + $0x4] sm:$0xf]
    %v60 = vld [vmem:[#allocation6 + $0x8] sm:$0xf]
    %v61 = vld [vmem:[#allocation6 + $0xc] sm:$0xf]
    %v62 = vld [vmem:[#allocation6 + $0x10] sm:$0xf]
    %v63 = vld [vmem:[#allocation6 + $0x14] sm:$0xf]
    %v64 = vld [vmem:[#allocation6 + $0x18] sm:$0xf]
    %v65 = vld [vmem:[#allocation6 + $0x1c] sm:$0xf]
    %v66 = vld [vmem:[#allocation6 + $0x20] sm:$0xf]
    %v67 = vld [vmem:[#allocation6 + $0x24] sm:$0xf]
    %v68 = vld [vmem:[#allocation6 + $0x28] sm:$0xf]
    %v69 = vld [vmem:[#allocation6 + $0x2c] sm:$0xf]
    %v70 = vld [vmem:[#allocation6 + $0x30] sm:$0xf]
    %v71 = vld [vmem:[#allocation6 + $0x34] sm:$0xf]
    %v72 = vld [vmem:[#allocation6 + $0x38] sm:$0xf]
    %v73 = vld [vmem:[#allocation6 + $0x3c] sm:$0xf]
    %v74 = vld [vmem:[%s2] sm:$0x1]
    %v76 = vlaneseq
    %v77 = vshrl.u32 %v76, 7
    %v78 = vsub.s32 0, %v77
    %v79 = vrot.slane %v74, %v78
    %v97 = vunpack.c.l.b16 %v58
    %v98 = vunpack.c.l.b16 %v59
    %v99 = vunpack.c.l.b16 %v60
    %v100 = vunpack.c.l.b16 %v61
    %v101 = vunpack.c.l.b16 %v62
    %v102 = vunpack.c.l.b16 %v63
    %v103 = vunpack.c.l.b16 %v64
    %v104 = vunpack.c.l.b16 %v65
    %v105 = vunpack.c.l.b16 %v66
    %v106 = vunpack.c.l.b16 %v67
    %v107 = vunpack.c.l.b16 %v68
    %v108 = vunpack.c.l.b16 %v69
    %v109 = vunpack.c.l.b16 %v70
    %v110 = vunpack.c.l.b16 %v71
    %v111 = vunpack.c.l.b16 %v72
    %v112 = vunpack.c.l.b16 %v73
    %v113 = vpack.c.b16 %v98, %v97
    %v114 = vpack.c.b16 %v100, %v99
    %v115 = vpack.c.b16 %v102, %v101
    %v116 = vpack.c.b16 %v104, %v103
    %v117 = vpack.c.b16 %v106, %v105
    %v118 = vpack.c.b16 %v108, %v107
    %v119 = vpack.c.b16 %v110, %v109
    %v120 = vpack.c.b16 %v112, %v111
    %129 = vmatprep.subr.bf16.mxu0 0
    %130 = vmatpush1.bf16.msra.mxu0 %v120
    %131 = vmatprep.subr.bf16.mxu0 0
    %132 = vmatpush1.bf16.msra.mxu0 %v119
    %133 = vmatprep.subr.bf16.mxu0 0
    %134 = vmatpush1.bf16.msra.mxu0 %v118
    %135 = vmatprep.subr.bf16.mxu0 0
    %136 = vmatpush1.bf16.msra.mxu0 %v117
    %137 = vmatprep.subr.bf16.mxu0 0
    %138 = vmatpush1.bf16.msra.mxu0 %v116
    %139 = vmatprep.subr.bf16.mxu0 0
    %140 = vmatpush1.bf16.msra.mxu0 %v115
    %141 = vmatprep.subr.bf16.mxu0 0
    %142 = vmatpush1.bf16.msra.mxu0 %v114
    %143 = vmatprep.subr.bf16.mxu0 0
    %144 = vmatpush1.bf16.msra.mxu0 %v113
    %145 = vmatprep.subr.bf16.mxu0 0
    %146 = vmatpush2.bf16.msra.mxu0 0
    %147 = vmatprep.subr.bf16.mxu0 0
    %148 = vmatpush2.bf16.msra.mxu0 0
    %149 = vmatprep.subr.bf16.mxu0 0
    %150 = vmatpush2.bf16.msra.mxu0 0
    %151 = vmatprep.subr.bf16.mxu0 0
    %152 = vmatpush2.bf16.msra.mxu0 0
    %153 = vmatprep.subr.bf16.mxu0 0
    %154 = vmatpush2.bf16.msra.mxu0 0
    %155 = vmatprep.subr.bf16.mxu0 0
    %156 = vmatpush2.bf16.msra.mxu0 0
    %157 = vmatprep.subr.bf16.mxu0 0
    %158 = vmatpush2.bf16.msra.mxu0 0
    %159 = vmatprep.subr.bf16.mxu0 0
    %160 = vmatpush2.bf16.msra.mxu0 0
    %161 = vmatprep.mubr.bf16.mxu0 0
    %162 = vmatmul.mubr.bf16.gmra.mxu0 %v57
    %v163 = vpop.f32.mrf.mxu0
    %v164 = vadd.f32 %v79, %v163
    %v165 = vpop.f32.mrf.mxu0
    %v166 = vpop.f32.mrf.mxu0
    %v167 = vpop.f32.mrf.mxu0
    %168 = vdwg.mxu0
    %v169 = vmax.f32 %v164, 0.0
    %v170 = vld [vmem:[%s3] sm:$0x1]
    %v172 = vlaneseq
    %v173 = vshrl.u32 %v172, 7
    %v174 = vsub.s32 0, %v173
    %v175 = vrot.slane %v170, %v174
    %v177 = vmul.f32 %v169, %v175
    %178 = vadd.xlane.f32.xlu0 %v177
    %v179 = vpop.xlane.xlu0 %178
    %s180 = sld [smem:[#allocation2]]
    %v181 = vstv %s180
    %v182 = vadd.f32 %v179, %v181
    %v184 = vlaneseq
    %v185 = vand.u32 %v184, 127
    %v186 = vlaneseq
    %v187 = vshrl.u32 %v186, 7
    %v188 = vsub.s32 %v185, %v187
    %v189 = vrot.slane %v182, %v188
    %vm190 = vcmask 1042434
    %v191 = vsel %vm190, %v189, %v189
    %vm192 = vcmask 1043459
    %v193 = vsel %vm192, %v189, %v191
    %vm194 = vcmask 1044484
    %v195 = vsel %vm194, %v189, %v193
    %vm196 = vcmask 1045509
    %v197 = vsel %vm196, %v189, %v195
    %vm198 = vcmask 1046534
    %v199 = vsel %vm198, %v189, %v197
    %vm200 = vcmask 1047559
    %v201 = vsel %vm200, %v189, %v199
    %vm203 = vcmask 64512
    %204 = vst.msk [vmem:[#allocation8] sm:$0xff] %vm203, %v201
    // Predicated region
    $region30: #{tpu_custom_call.1} parent=1 // pred_check
      _
    $region31: #{tpu_custom_call.1} parent=1 // pred_check_branch
      %206 = sbr.rel (0) target = $region33
    $region32: #{tpu_custom_call.1} parent=1 // pred_region
      %s208 = ssub.s32 128, 128
      %209 = vsyncadd [#allocation5], %s208
      %s211 = sshll.u32 [#allocation8], 4
      %s212 = int_to_ptr.vmem [resolvable:$true] %s211
      %214 = dma.vmem_to_hbm [thread:$0]  %s212, 128, %s5, [#allocation5]
    $region33: #{tpu_custom_call.1} parent=1 // pred_fallthru
      _
    // Predicated region
    $region34: #{tpu_custom_call.1} parent=1 // pred_check
      _
    $region35: #{tpu_custom_call.1} parent=1 // pred_check_branch
      %216 = sbr.rel (0) target = $region37
    $region36: #{tpu_custom_call.1} parent=1 // pred_region
      %217 = dma.done [#allocation5], 128
    $region37: #{tpu_custom_call.1} parent=1 // pred_fallthru
      _
    %218 = vsyncpa [#allocation4], 1
    %219 = vsyncpa [#allocation7], 1
    %220 = vsyncpa [#allocation5], 1

</llo_original>
